<compile_context>
chip_gen: v7x
topology: tpu7x:2x2x1
jax: 0.10.0
libtpu: 0.0.40
codegen_flags: <defaults>
</compile_context>

<pallas_src>
import jax
import jax.numpy as jnp
import numpy as np
from jax.experimental import pallas as pl
from jax.experimental.pallas import tpu as pltpu


def make_inverse_spectrogram(n_fft: int):
    """Builds the iSTFT callable (equivalent of Decoder with in_channels=n_fft)."""
    assert n_fft % 2 == 0 and n_fft % 128 == 0
    hop = n_fft // 2
    nfreq = n_fft // 2 + 1

    # sqrt of the periodic Hann window (cuda_sqrt_hann_window).
    n_idx = np.arange(n_fft, dtype=np.float64)
    window = np.sqrt(0.5 * (1.0 - np.cos(2.0 * np.pi * n_idx / n_fft)))

    # irfft-as-matmul synthesis matrix for a onesided Hermitian spectrum.
    # Row layout: [Re bins 0..F-1 | Im bins 1..F-2].  Contains the 1/N scale,
    # the 2x Hermitian weights and the sqrt-Hann synthesis window.
    k = np.arange(nfreq, dtype=np.float64)[:, None]
    ang = 2.0 * np.pi * k * n_idx[None, :] / n_fft
    scale = np.where((np.arange(nfreq) == 0) | (np.arange(nfreq) == n_fft // 2),
                     1.0, 2.0) / n_fft
    cw = (scale[:, None] * np.cos(ang)) * window[None, :]     # (F, n_fft)
    sw = (-scale[:, None] * np.sin(ang)) * window[None, :]    # (F, n_fft)
    w_full = jnp.asarray(np.concatenate([cw, sw[1:-1]], axis=0), jnp.bfloat16)

    # NOTE: torch.istft's window-envelope division is a no-op here (envelope==1).

    def _kernel(x_ref, w_ref, o_ref, carry_ref):
        # x_ref : (1, Tt, n_fft) bf16   packed spectrum frames
        # w_ref : (n_fft, n_fft) bf16   windowed irfft matrix
        # o_ref : (1, Tt, hop)   f32    out[r] = frames[r,:hop] + frames[r-1,hop:]
        # carry_ref: (1, hop)    f32    frames[last, hop:] of the previous tile
        t = pl.program_id(1)

        @pl.when(t == 0)
        def _():
            # Row 0 of the output (the center-trim region) is discarded by the
            # wrapper; zeroing just keeps the padded region free of garbage.
            carry_ref[...] = jnp.zeros_like(carry_ref)

        frames = jnp.dot(x_ref[0], w_ref[...],
                         preferred_element_type=jnp.float32)      # (Tt, n_fft)
        tt = frames.shape[0]
        tail = frames[:, hop:]                                    # (Tt, hop)
        shifted = jnp.concatenate([carry_ref[...], tail[:tt - 1, :]], axis=0)
        o_ref[0] = frames[:, :hop] + shifted
        carry_ref[...] = tail[tt - 1:, :]

    def inverse_spectrogram(x):
        # x: complex spectrogram, shape (B, F, T) with F = n_fft//2 + 1.
        B, F, T = x.shape
        assert F == nfreq and T >= 2
        S = T - 1                               # output segments of `hop` each

        # Time tile: multiple of 16 (bf16 sublane packing), capped at 512
        # (per-step DMA >> the ~0.35us grid-step overhead, ~3 MiB VMEM).
        Tt = 512 if T >= 512 else ((T + 15) // 16) * 16
        n_t = pl.cdiv(T, Tt)
        T_pad = n_t * Tt

        # Pack the spectrum: Xp[t] = [Re bins | Im bins 1..F-2]  -> (B, T, n_fft)
        xr = jnp.real(x)
        xi = jnp.imag(x)
        packed = jnp.concatenate([xr, xi[:, 1:-1, :]], axis=1)    # (B, n_fft, T)
        packed = jnp.transpose(packed, (0, 2, 1)).astype(jnp.bfloat16)
        if T_pad > T:
            packed = jnp.pad(packed, ((0, 0), (0, T_pad - T), (0, 0)))

        out = pl.pallas_call(
            _kernel,
            out_shape=jax.ShapeDtypeStruct((B, T_pad, hop), jnp.float32),
            grid_spec=pltpu.PrefetchScalarGridSpec(
                num_scalar_prefetch=0,
                grid=(B, n_t),
                in_specs=[
                    pl.BlockSpec((1, Tt, n_fft), lambda b, t: (b, t, 0)),
                    pl.BlockSpec((n_fft, n_fft), lambda b, t: (0, 0)),
                ],
                out_specs=pl.BlockSpec((1, Tt, hop), lambda b, t: (b, t, 0)),
                scratch_shapes=[pltpu.VMEM((1, hop), jnp.float32)],
            ),
            compiler_params=pltpu.CompilerParams(
                dimension_semantics=("parallel", "arbitrary")),
        )(packed, w_full)

        # Row r (= s+1) of `out` is output segment s; row 0 and rows >= T are
        # the center-trim / zero-padded regions and are dropped.
        return out[:, 1:T, :].reshape(B, S * hop)

    return inverse_spectrogram


def _reference_istft_numpy(x, n_fft):
    """Pure numpy (float64) reference of torch.istft with sqrt-Hann window."""
    hop = n_fft // 2
    B, F, T = x.shape
    n_idx = np.arange(n_fft, dtype=np.float64)
    window = np.sqrt(0.5 * (1.0 - np.cos(2.0 * np.pi * n_idx / n_fft)))
    frames = np.fft.irfft(np.asarray(x, np.complex128), n=n_fft, axis=1)  # (B, n_fft, T)
    frames = frames * window[None, :, None]
    L = (T - 1) * hop + n_fft
    y = np.zeros((B, L))
    e = np.zeros((L,))
    for t in range(T):
        y[:, t * hop:t * hop + n_fft] += frames[:, :, t]
        e[t * hop:t * hop + n_fft] += window ** 2
    y = y[:, hop:-hop]
    e = e[hop:-hop]
    return y / e[None, :]


if __name__ == "__main__":
    # Small shapes consistent with the module (n_fft == in_channels).
    n_fft = 256           # module default is 512; scaled down for the test
    hop = n_fft // 2
    B, T = 2, 16
    F = n_fft // 2 + 1

    key = jax.random.PRNGKey(0)
    kr, ki = jax.random.split(key)
    xr = jax.random.normal(kr, (B, F, T), jnp.float32)
    xi = jax.random.normal(ki, (B, F, T), jnp.float32)
    # DC / Nyquist bins of a real-signal STFT are real-valued.
    xi = xi.at[:, 0, :].set(0.0).at[:, -1, :].set(0.0)
    x = xr + 1j * xi      # complex spectrogram, (B, F, T)

    decoder = make_inverse_spectrogram(n_fft)
    y = decoder(x)
    jax.block_until_ready(y)

    assert y.shape == (B, (T - 1) * hop), y.shape

    y_ref = _reference_istft_numpy(np.asarray(x), n_fft)
    # bf16 operands / f32 accumulation -> slightly looser tolerance than f32.
    np.testing.assert_allclose(np.asarray(y), y_ref, rtol=2e-2, atol=2e-2)

    print("KERNEL_OK")
</pallas_src>

<mosaic_0001>
module attributes {stable_mosaic.version = 11 : i64} {
  func.func @_kernel(%arg0: i32, %arg1: i32, %arg2: memref<1x16x256xbf16, #tpu.memory_space<vmem>>, %arg3: memref<256x256xbf16, #tpu.memory_space<vmem>>, %arg4: memref<1x16x128xf32, #tpu.memory_space<vmem>>, %arg5: memref<1x128xf32, #tpu.memory_space<vmem>>) attributes {dimension_semantics = [#tpu.dimension_semantics<parallel>, #tpu.dimension_semantics<arbitrary>], iteration_bounds = array<i64: 2, 1>, scalar_prefetch = 0 : i64, scratch_operands = 1 : i64, tpu.core_type = #tpu.core_type<tc>, window_params = [{transform_indices = @transform_0, window_bounds = array<i64: 1, 16, 256>}, {pipeline_mode = #tpu.pipeline_mode<synchronous>, transform_indices = @transform_1, window_bounds = array<i64: 256, 256>}, {transform_indices = @transform_2, window_bounds = array<i64: 1, 16, 128>}]} {
    %c0_i32 = arith.constant 0 : i32
    %0 = arith.cmpi eq, %arg1, %c0_i32 : i32
    %1 = arith.extui %0 : i1 to i32
    %c0_i32_0 = arith.constant 0 : i32
    %2 = arith.cmpi ne, %1, %c0_i32_0 : i32
    scf.if %2 {
      %cst_12 = arith.constant 0.000000e+00 : f32
      %18 = vector.broadcast %cst_12 : f32 to vector<1x128xf32>
      %c0_13 = arith.constant 0 : index
      %c0_14 = arith.constant 0 : index
      %19 = vector.load %arg5[%c0_13, %c0_14] : memref<1x128xf32, #tpu.memory_space<vmem>>, vector<1x128xf32>
      tpu.vector_store %arg5[%c0_13, %c0_14], %18 {strides = array<i32>} : memref<1x128xf32, #tpu.memory_space<vmem>>, vector<1x128xf32>,
    } else {
    }
    %c0 = arith.constant 0 : index
    %c0_1 = arith.constant 0 : index
    %c0_2 = arith.constant 0 : index
    %3 = vector.load %arg2[%c0, %c0_1, %c0_2] : memref<1x16x256xbf16, #tpu.memory_space<vmem>>, vector<1x16x256xbf16>
    %4 = vector.shape_cast %3 : vector<1x16x256xbf16> to vector<16x256xbf16>
    %c0_3 = arith.constant 0 : index
    %c0_4 = arith.constant 0 : index
    %5 = vector.load %arg3[%c0_3, %c0_4] : memref<256x256xbf16, #tpu.memory_space<vmem>>, vector<256x256xbf16>
    %cst = arith.constant dense<0.000000e+00> : vector<16x256xf32>
    %6 = tpu.matmul %4, %5, %cst {dimension_numbers = #tpu.dot_dimension_numbers<[1], [0], [0], [1], [0, 0, 1, 1], [], []>} : vector<16x256xbf16>, vector<256x256xbf16>, vector<16x256xf32> -> vector<16x256xf32>
    %7 = vector.extract_strided_slice %6 {offsets = [0, 128], sizes = [16, 128], strides = [1, 1]} : vector<16x256xf32> to vector<16x128xf32>
    %c0_5 = arith.constant 0 : index
    %c0_6 = arith.constant 0 : index
    %8 = vector.load %arg5[%c0_5, %c0_6] : memref<1x128xf32, #tpu.memory_space<vmem>>, vector<1x128xf32>
    %9 = vector.extract_strided_slice %7 {offsets = [0, 0], sizes = [15, 128], strides = [1, 1]} : vector<16x128xf32> to vector<15x128xf32>
    %10 = tpu.concatenate %8, %9 in 0 : vector<1x128xf32>, vector<15x128xf32> -> vector<16x128xf32>
    %11 = vector.extract_strided_slice %6 {offsets = [0, 0], sizes = [16, 128], strides = [1, 1]} : vector<16x256xf32> to vector<16x128xf32>
    %12 = arith.addf %11, %10 : vector<16x128xf32>
    %c0_7 = arith.constant 0 : index
    %c0_8 = arith.constant 0 : index
    %c0_9 = arith.constant 0 : index
    %13 = vector.load %arg4[%c0_7, %c0_8, %c0_9] : memref<1x16x128xf32, #tpu.memory_space<vmem>>, vector<1x16x128xf32>
    %14 = vector.shape_cast %13 : vector<1x16x128xf32> to vector<16x128xf32>
    %15 = vector.shape_cast %12 : vector<16x128xf32> to vector<1x16x128xf32>
    tpu.vector_store %arg4[%c0_7, %c0_8, %c0_9], %15 {strides = array<i32>} : memref<1x16x128xf32, #tpu.memory_space<vmem>>, vector<1x16x128xf32>,
    %16 = vector.extract_strided_slice %7 {offsets = [15, 0], sizes = [1, 128], strides = [1, 1]} : vector<16x128xf32> to vector<1x128xf32>
    %c0_10 = arith.constant 0 : index
    %c0_11 = arith.constant 0 : index
    %17 = vector.load %arg5[%c0_10, %c0_11] : memref<1x128xf32, #tpu.memory_space<vmem>>, vector<1x128xf32>
    tpu.vector_store %arg5[%c0_10, %c0_11], %16 {strides = array<i32>} : memref<1x128xf32, #tpu.memory_space<vmem>>, vector<1x128xf32>,
    return
  }
  func.func @transform_0(%arg0: i32, %arg1: i32) -> (i32, i32, i32) {
    %c0_i32 = arith.constant 0 : i32
    %c0_i32_0 = arith.constant 0 : i32
    return %arg0, %arg1, %c0_i32 : i32, i32, i32
  }
  func.func @transform_1(%arg0: i32, %arg1: i32) -> (i32, i32) {
    %c0_i32 = arith.constant 0 : i32
    %c0_i32_0 = arith.constant 0 : i32
    %c0_i32_1 = arith.constant 0 : i32
    return %c0_i32, %c0_i32_0 : i32, i32
  }
  func.func @transform_2(%arg0: i32, %arg1: i32) -> (i32, i32, i32) {
    %c0_i32 = arith.constant 0 : i32
    %c0_i32_0 = arith.constant 0 : i32
    return %arg0, %arg1, %c0_i32 : i32, i32, i32
  }
}

</mosaic_0001>

<llo_original>
// kernel: tpu_custom_call.1
$region0: #{tpu_custom_call.1}
  #allocation0 [shape = 'u32[]', space=smem, size = 0x4, offset = 0x4, fixed_abs, tag = 'smem constant byte address 0x4 - core index']
  #allocation1 [shape = 'u32[144,128]{1,0:T(1,128)}', space=vmem, size = 0x12000, scoped, tag = 'internal scratch']
  #allocation2 [shape = 'f32[1,128]{1,0:T(1,128)}', space=vmem, size = 0x200, scoped, tag = 'scratch operand']
  %s0 = inlined_call_operand.hbm [shape: bf16[2,16,256], index: 0, kind: input, shape index: {}]
  %s1 = inlined_call_operand.hbm [shape: bf16[256,256], index: 1, kind: input, shape index: {}]
  %s2 = inlined_call_operand.hbm [shape: f32[2,16,128], index: 2, kind: output, shape index: {}]
  %s3 = sld [smem:[#allocation0]]
  $region53: #{tpu_custom_call.1} parent=0
    _
  %s5 = ssub.s32 1, %s3
  %s6 = scalar_select 0, %s5, %s3
  $region1: #{tpu_custom_call.1} parent=0
    #allocation3 [shape = 'u8[16384]{0}', space=vmem, size = 0x4000, scoped, tag = 'input window, operand 0']
    #allocation4 [shape = 's32[2]{0}', space=sflag, size = 0x8, scoped, tag = 'scoped memory for tpu_custom_call.1']
    #allocation5 [shape = 's32[2]{0}', space=sflag, size = 0x8, scoped, tag = 'scoped memory for tpu_custom_call.1']
    #allocation6 [shape = 'u8[131072]{0}', space=vmem, size = 0x20000, scoped, tag = 'input window, operand 1, single buffered']
    #allocation7 [shape = 's32[1]{0}', space=sflag, size = 0x4, scoped, tag = 'scoped memory for tpu_custom_call.1']
    #allocation8 [shape = 'u8[16384]{0}', space=vmem, size = 0x4000, scoped, tag = 'output window, operand 0']
    %7 = vsyncpa [#allocation4], 0
    %s8 = scalar_lea.sflag [#allocation4], 1
    %9 = vsyncpa %s8, 0
    %10 = vsyncpa [#allocation7], 0
    %11 = vsyncpa [#allocation5], 0
    %s12 = scalar_lea.sflag [#allocation5], 1
    %13 = vsyncpa %s12, 0
    loop: start=0, step=1, limit=4
    $region2: #{tpu_custom_call.1} parent=1 // loop_pre_header
      _
    $region3: #{tpu_custom_call.1} parent=1 // loop_header
      %s15 = sphi 0, %s19
      %p16 = scmp.ge.s32.totalorder %s15, 4
      %s22 = sphi 0, %s34
      %s23 = sphi 0, %s30
      %s24 = sphi 0, %s22
      %s25 = sphi 0, %s23
      %s26 = sphi 0, %s24
      %s27 = sphi 0, %s25
      %s39 = sphi 0, %s41
      %s42 = sphi 0, %s39
      %s43 = sphi 0, %s42
      %s59 = sphi 0, %s43
      %s63 = sphi 0, %s63
      %s65 = sphi 0, %s63
      %s66 = sphi 0, %s65
      %s80 = sphi 0, %s66
      %s88 = sphi 0, %s90
      %s91 = sphi 0, %s88
      %s92 = sphi 0, %s91
      %s108 = sphi 0, %s92
    $region4: #{tpu_custom_call.1} parent=1 // loop_header_branch
      %18 = sbr.rel (%p16) target = $region8
    $region5: #{tpu_custom_call.1} parent=1 // loop_body
      %s20 = ssub.s32 %s15, 1
      %s21 = ssub.s32 %s15, 2
      %s28 = sadd.s32 1, %s23
      %p29 = scmp.ge.s32.totalorder %s28, 1
      %s30 = scalar_select %p29, 0, %s28
      %s31 = sadd.s32 1, %s22
      %s32 = scalar_select %p29, %s31, %s22
      %p33 = scmp.ge.s32.totalorder %s32, 2
      %s34 = scalar_select %p33, 0, %s32
      %s35 = ssub.s32 %s22, %s34
      %s36 = ssub.s32 %s23, %s30
      %s37 = sor.u32 %s35, %s36
      %p38 = scmp.eq.s32.totalorder %s37, 0
      %s40 = sadd.s32 %s39, 1
      %s41 = scalar_select %p38, %s39, %s40
      %p44 = pneg %p38
      %p45 = scmp.eq.s32.totalorder %s15, 1
      %p46 = por %p44, %p45
      %p47 = scmp.ne.s32.totalorder %s39, %s42
      %p48 = scmp.eq.s32.totalorder %s15, 0
      %p49 = por %p47, %p48
      %p50 = scmp.ne.s32.totalorder %s39, %s42
      %p51 = scmp.eq.s32.totalorder %s20, 1
      %p52 = por %p50, %p51
      %p53 = scmp.ne.s32.totalorder %s42, %s43
      %p54 = scmp.eq.s32.totalorder %s20, 0
      %p55 = por %p53, %p54
      %p56 = scmp.ne.s32.totalorder %s42, %s43
      %p57 = scmp.eq.s32.totalorder %s21, 1
      %p58 = por %p56, %p57
      %p60 = scmp.ne.s32.totalorder %s43, %s59
      %p61 = scmp.eq.s32.totalorder %s21, 0
      %p62 = por %p60, %p61
      %s64 = sadd.s32 %s63, 1
      %p67 = scmp.eq.s32.totalorder %s15, 1
      %p68 = scmp.ne.s32.totalorder %s63, %s65
      %p69 = scmp.eq.s32.totalorder %s15, 0
      %p70 = por %p68, %p69
      %p71 = scmp.ne.s32.totalorder %s63, %s65
      %p72 = scmp.eq.s32.totalorder %s20, 1
      %p73 = por %p71, %p72
      %p74 = scmp.ne.s32.totalorder %s65, %s66
      %p75 = scmp.eq.s32.totalorder %s20, 0
      %p76 = por %p74, %p75
      %p77 = scmp.ne.s32.totalorder %s65, %s66
      %p78 = scmp.eq.s32.totalorder %s21, 1
      %p79 = por %p77, %p78
      %p81 = scmp.ne.s32.totalorder %s66, %s80
      %p82 = scmp.eq.s32.totalorder %s21, 0
      %p83 = por %p81, %p82
      %s84 = ssub.s32 %s22, %s34
      %s85 = ssub.s32 %s23, %s30
      %s86 = sor.u32 %s84, %s85
      %p87 = scmp.eq.s32.totalorder %s86, 0
      %s89 = sadd.s32 %s88, 1
      %s90 = scalar_select %p87, %s88, %s89
      %p93 = pneg %p87
      %p94 = scmp.eq.s32.totalorder %s15, 1
      %p95 = por %p93, %p94
      %p96 = scmp.ne.s32.totalorder %s88, %s91
      %p97 = scmp.eq.s32.totalorder %s15, 0
      %p98 = por %p96, %p97
      %p99 = scmp.ne.s32.totalorder %s88, %s91
      %p100 = scmp.eq.s32.totalorder %s20, 1
      %p101 = por %p99, %p100
      %p102 = scmp.ne.s32.totalorder %s91, %s92
      %p103 = scmp.eq.s32.totalorder %s20, 0
      %p104 = por %p102, %p103
      %p105 = scmp.ne.s32.totalorder %s91, %s92
      %p106 = scmp.eq.s32.totalorder %s21, 1
      %p107 = por %p105, %p106
      %p109 = scmp.ne.s32.totalorder %s92, %s108
      %p110 = scmp.eq.s32.totalorder %s21, 0
      %p111 = por %p109, %p110
      %p112 = scmp.le.s32.totalorder 1, %s15
      %p113 = scmp.lt.s32.totalorder %s15, 3
      %p114 = pnand %p112, %p113
      %p115 = pneg %p114
      // Predicated region
      $region9: #{tpu_custom_call.1} parent=5 // pred_check
        _
      $region10: #{tpu_custom_call.1} parent=5 // pred_check_branch
        %117 = sbr.rel (%p114) target = $region12
      $region11: #{tpu_custom_call.1} parent=5 // pred_region
        %s118 = ssub.s32 %s15, 1
        // Predicated region
        $region13: #{tpu_custom_call.1} parent=11 // pred_check
          %p119 = pneg %p76
        $region14: #{tpu_custom_call.1} parent=11 // pred_check_branch
          %121 = sbr.rel (%p119) target = $region16
        $region15: #{tpu_custom_call.1} parent=11 // pred_region
          %s123 = ssub.s32 4096, 4096
          %124 = vsyncadd [#allocation7], %s123
          %s125 = sshll.u32 [#allocation6], 4
          %s126 = int_to_ptr.vmem [resolvable:$true] %s125
          %131 = dma.hbm_to_vmem [thread:$0]  %s1, 4096, %s126, [#allocation7], 128, 128, 8
        $region16: #{tpu_custom_call.1} parent=11 // pred_fallthru
          _
      $region12: #{tpu_custom_call.1} parent=5 // pred_fallthru
        _
      %p132 = scmp.lt.s32.totalorder %s15, 2
      // Predicated region
      $region17: #{tpu_custom_call.1} parent=5 // pred_check
        %p133 = pneg %p132
      $region18: #{tpu_custom_call.1} parent=5 // pred_check_branch
        %135 = sbr.rel (%p133) target = $region20
      $region19: #{tpu_custom_call.1} parent=5 // pred_region
        // Predicated region
        $region21: #{tpu_custom_call.1} parent=19 // pred_check
          %p136 = pneg %p49
        $region22: #{tpu_custom_call.1} parent=19 // pred_check_branch
          %138 = sbr.rel (%p136) target = $region24
        $region23: #{tpu_custom_call.1} parent=19 // pred_region
          %s139 = sand.u32 %s39, 1
          %s140 = scalar_lea.sflag [#allocation4], %s139
          %s141 = sand.u32 %s39, 1
          %s142 = smul.addr %s141, 16
          %s143 = scalar_lea.vmem [#allocation3], %s142
          %s144 = smul.u32 2, %s23
          %s146 = ssub.s32 256, 256
          %147 = vsyncadd %s140, %s146
          %s148 = smul.addr %s144, 2
          %s149 = smul.addr %s22, 4
          %s150 = sadd.s32 %s148, %s149
          %s151 = smul.addr %s150, 64
          %s152 = scalar_lea.hbm %s0, %s151
          %s153 = sshll.u32 %s143, 4
          %s154 = int_to_ptr.vmem [resolvable:$true] %s153
          %159 = dma.hbm_to_vmem [thread:$0]  %s152, 256, %s154, %s140, 128, 128, 8
        $region24: #{tpu_custom_call.1} parent=19 // pred_fallthru
          _
      $region20: #{tpu_custom_call.1} parent=5 // pred_fallthru
        _
      %p160 = scmp.le.s32.totalorder 1, %s15
      %p161 = scmp.lt.s32.totalorder %s15, 3
      %p162 = pnand %p160, %p161
      %p163 = pneg %p162
      // Predicated region
      $region25: #{tpu_custom_call.1} parent=5 // pred_check
        _
      $region26: #{tpu_custom_call.1} parent=5 // pred_check_branch
        %165 = sbr.rel (%p162) target = $region28
      $region27: #{tpu_custom_call.1} parent=5 // pred_region
        %s166 = ssub.s32 %s15, 1
        %s167 = sand.u32 %s42, 1
        %s168 = scalar_lea.sflag [#allocation4], %s167
        %s169 = sand.u32 %s42, 1
        %s170 = smul.addr %s169, 16
        %s171 = scalar_lea.vmem [#allocation3], %s170
        // Predicated region
        $region29: #{tpu_custom_call.1} parent=27 // pred_check
          %p172 = pneg %p55
        $region30: #{tpu_custom_call.1} parent=27 // pred_check_branch
          %174 = sbr.rel (%p172) target = $region32
        $region31: #{tpu_custom_call.1} parent=27 // pred_region
          %175 = dma.done %s168, 256
        $region32: #{tpu_custom_call.1} parent=27 // pred_fallthru
          _
        // Predicated region
        $region33: #{tpu_custom_call.1} parent=27 // pred_check
          %p176 = pneg %p76
        $region34: #{tpu_custom_call.1} parent=27 // pred_check_branch
          %178 = sbr.rel (%p176) target = $region36
        $region35: #{tpu_custom_call.1} parent=27 // pred_region
          %179 = dma.done [#allocation7], 4096
        $region36: #{tpu_custom_call.1} parent=27 // pred_fallthru
          _
        %s180 = sand.u32 %s42, 1
        %s181 = scalar_lea.sflag [#allocation4], %s180
        %s182 = sand.u32 %s42, 1
        %s183 = smul.addr %s182, 16
        %s184 = scalar_lea.vmem [#allocation3], %s183
        %p185 = pneg %p55
        %p186 = pneg %p52
        %p187 = pneg %p76
        %p188 = pneg %p73
        %p189 = pneg %p104
        %p190 = pneg %p101
        %s191 = sand.u32 %s91, 1
        %s192 = scalar_lea.sflag [#allocation5], %s191
        %s193 = sand.u32 %s91, 1
        %s194 = smul.addr %s193, 16
        %s195 = scalar_lea.vmem [#allocation8], %s194
        %s196 = smul.u32 2, %s25
        %s197 = smul.u32 2, %s25
        %p198 = scmp.eq.s32.totalorder %s25, 0
        // Predicated region
        $region37: #{tpu_custom_call.1} parent=27 // pred_check
          %p199 = pneg %p198
        $region38: #{tpu_custom_call.1} parent=27 // pred_check_branch
          %201 = sbr.rel (%p199) target = $region40
        $region39: #{tpu_custom_call.1} parent=27 // pred_region
          %202 = vst [vmem:[#allocation2] sm:$0x1] 0.0
        $region40: #{tpu_custom_call.1} parent=27 // pred_fallthru
          _
        %v203 = vld [vmem:[%s171] sm:$0xff]
        %v204 = vld [vmem:[%s171 + $0x8] sm:$0xff]
        %v205 = vld [vmem:[#allocation6] sm:$0xff]
        %v206 = vld [vmem:[#allocation6 + $0x8] sm:$0xff]
        %v207 = vld [vmem:[#allocation6 + $0x10] sm:$0xff]
        %v208 = vld [vmem:[#allocation6 + $0x18] sm:$0xff]
        %v209 = vld [vmem:[#allocation6 + $0x20] sm:$0xff]
        %v210 = vld [vmem:[#allocation6 + $0x28] sm:$0xff]
        %v211 = vld [vmem:[#allocation6 + $0x30] sm:$0xff]
        %v212 = vld [vmem:[#allocation6 + $0x38] sm:$0xff]
        %v213 = vld [vmem:[#allocation6 + $0x40] sm:$0xff]
        %v214 = vld [vmem:[#allocation6 + $0x48] sm:$0xff]
        %v215 = vld [vmem:[#allocation6 + $0x50] sm:$0xff]
        %v216 = vld [vmem:[#allocation6 + $0x58] sm:$0xff]
        %v217 = vld [vmem:[#allocation6 + $0x60] sm:$0xff]
        %v218 = vld [vmem:[#allocation6 + $0x68] sm:$0xff]
        %v219 = vld [vmem:[#allocation6 + $0x70] sm:$0xff]
        %v220 = vld [vmem:[#allocation6 + $0x78] sm:$0xff]
        %v221 = vld [vmem:[#allocation6 + $0x80] sm:$0xff]
        %v222 = vld [vmem:[#allocation6 + $0x88] sm:$0xff]
        %v223 = vld [vmem:[#allocation6 + $0x90] sm:$0xff]
        %v224 = vld [vmem:[#allocation6 + $0x98] sm:$0xff]
        %v225 = vld [vmem:[#allocation6 + $0xa0] sm:$0xff]
        %v226 = vld [vmem:[#allocation6 + $0xa8] sm:$0xff]
        %v227 = vld [vmem:[#allocation6 + $0xb0] sm:$0xff]
        %v228 = vld [vmem:[#allocation6 + $0xb8] sm:$0xff]
        %v229 = vld [vmem:[#allocation6 + $0xc0] sm:$0xff]
        %v230 = vld [vmem:[#allocation6 + $0xc8] sm:$0xff]
        %v231 = vld [vmem:[#allocation6 + $0xd0] sm:$0xff]
        %v232 = vld [vmem:[#allocation6 + $0xd8] sm:$0xff]
        %v233 = vld [vmem:[#allocation6 + $0xe0] sm:$0xff]
        %v234 = vld [vmem:[#allocation6 + $0xe8] sm:$0xff]
        %v235 = vld [vmem:[#allocation6 + $0xf0] sm:$0xff]
        %v236 = vld [vmem:[#allocation6 + $0xf8] sm:$0xff]
        %v239 = vunpack.c.l.b16 %v203
        %v240 = vunpack.c.h.b16 %v203
        %v241 = vunpack.c.l.b16 %v204
        %v242 = vunpack.c.h.b16 %v204
        %v243 = vpack.c.b16 %v241, %v239
        %v244 = vpack.c.b16 %v242, %v240
        %v279 = vunpack.c.l.b16 %v205
        %v280 = vunpack.c.h.b16 %v205
        %v281 = vunpack.c.l.b16 %v206
        %v282 = vunpack.c.h.b16 %v206
        %v283 = vunpack.c.l.b16 %v207
        %v284 = vunpack.c.h.b16 %v207
        %v285 = vunpack.c.l.b16 %v208
        %v286 = vunpack.c.h.b16 %v208
        %v287 = vunpack.c.l.b16 %v209
        %v288 = vunpack.c.h.b16 %v209
        %v289 = vunpack.c.l.b16 %v210
        %v290 = vunpack.c.h.b16 %v210
        %v291 = vunpack.c.l.b16 %v211
        %v292 = vunpack.c.h.b16 %v211
        %v293 = vunpack.c.l.b16 %v212
        %v294 = vunpack.c.h.b16 %v212
        %v295 = vunpack.c.l.b16 %v213
        %v296 = vunpack.c.h.b16 %v213
        %v297 = vunpack.c.l.b16 %v214
        %v298 = vunpack.c.h.b16 %v214
        %v299 = vunpack.c.l.b16 %v215
        %v300 = vunpack.c.h.b16 %v215
        %v301 = vunpack.c.l.b16 %v216
        %v302 = vunpack.c.h.b16 %v216
        %v303 = vunpack.c.l.b16 %v217
        %v304 = vunpack.c.h.b16 %v217
        %v305 = vunpack.c.l.b16 %v218
        %v306 = vunpack.c.h.b16 %v218
        %v307 = vunpack.c.l.b16 %v219
        %v308 = vunpack.c.h.b16 %v219
        %v309 = vunpack.c.l.b16 %v220
        %v310 = vunpack.c.h.b16 %v220
        %v311 = vunpack.c.l.b16 %v221
        %v312 = vunpack.c.h.b16 %v221
        %v313 = vunpack.c.l.b16 %v222
        %v314 = vunpack.c.h.b16 %v222
        %v315 = vunpack.c.l.b16 %v223
        %v316 = vunpack.c.h.b16 %v223
        %v317 = vunpack.c.l.b16 %v224
        %v318 = vunpack.c.h.b16 %v224
        %v319 = vunpack.c.l.b16 %v225
        %v320 = vunpack.c.h.b16 %v225
        %v321 = vunpack.c.l.b16 %v226
        %v322 = vunpack.c.h.b16 %v226
        %v323 = vunpack.c.l.b16 %v227
        %v324 = vunpack.c.h.b16 %v227
        %v325 = vunpack.c.l.b16 %v228
        %v326 = vunpack.c.h.b16 %v228
        %v327 = vunpack.c.l.b16 %v229
        %v328 = vunpack.c.h.b16 %v229
        %v329 = vunpack.c.l.b16 %v230
        %v330 = vunpack.c.h.b16 %v230
        %v331 = vunpack.c.l.b16 %v231
        %v332 = vunpack.c.h.b16 %v231
        %v333 = vunpack.c.l.b16 %v232
        %v334 = vunpack.c.h.b16 %v232
        %v335 = vunpack.c.l.b16 %v233
        %v336 = vunpack.c.h.b16 %v233
        %v337 = vunpack.c.l.b16 %v234
        %v338 = vunpack.c.h.b16 %v234
        %v339 = vunpack.c.l.b16 %v235
        %v340 = vunpack.c.h.b16 %v235
        %v341 = vunpack.c.l.b16 %v236
        %v342 = vunpack.c.h.b16 %v236
        %v343 = vpack.c.b16 %v281, %v279
        %v344 = vpack.c.b16 %v282, %v280
        %v345 = vpack.c.b16 %v285, %v283
        %v346 = vpack.c.b16 %v286, %v284
        %v347 = vpack.c.b16 %v289, %v287
        %v348 = vpack.c.b16 %v290, %v288
        %v349 = vpack.c.b16 %v293, %v291
        %v350 = vpack.c.b16 %v294, %v292
        %v351 = vpack.c.b16 %v297, %v295
        %v352 = vpack.c.b16 %v298, %v296
        %v353 = vpack.c.b16 %v301, %v299
        %v354 = vpack.c.b16 %v302, %v300
        %v355 = vpack.c.b16 %v305, %v303
        %v356 = vpack.c.b16 %v306, %v304
        %v357 = vpack.c.b16 %v309, %v307
        %v358 = vpack.c.b16 %v310, %v308
        %v359 = vpack.c.b16 %v313, %v311
        %v360 = vpack.c.b16 %v314, %v312
        %v361 = vpack.c.b16 %v317, %v315
        %v362 = vpack.c.b16 %v318, %v316
        %v363 = vpack.c.b16 %v321, %v319
        %v364 = vpack.c.b16 %v322, %v320
        %v365 = vpack.c.b16 %v325, %v323
        %v366 = vpack.c.b16 %v326, %v324
        %v367 = vpack.c.b16 %v329, %v327
        %v368 = vpack.c.b16 %v330, %v328
        %v369 = vpack.c.b16 %v333, %v331
        %v370 = vpack.c.b16 %v334, %v332
        %v371 = vpack.c.b16 %v337, %v335
        %v372 = vpack.c.b16 %v338, %v336
        %v373 = vpack.c.b16 %v341, %v339
        %v374 = vpack.c.b16 %v342, %v340
        %407 = vmatprep.subr.bf16.mxu0 %v344
        %408 = vmatpush1.bf16.msra.mxu0 %v343
        %409 = vmatprep.subr.bf16.mxu0 %v346
        %410 = vmatpush1.bf16.msra.mxu0 %v345
        %411 = vmatprep.subr.bf16.mxu0 %v348
        %412 = vmatpush1.bf16.msra.mxu0 %v347
        %413 = vmatprep.subr.bf16.mxu0 %v350
        %414 = vmatpush1.bf16.msra.mxu0 %v349
        %415 = vmatprep.subr.bf16.mxu0 %v352
        %416 = vmatpush1.bf16.msra.mxu0 %v351
        %417 = vmatprep.subr.bf16.mxu0 %v354
        %418 = vmatpush1.bf16.msra.mxu0 %v353
        %419 = vmatprep.subr.bf16.mxu0 %v356
        %420 = vmatpush1.bf16.msra.mxu0 %v355
        %421 = vmatprep.subr.bf16.mxu0 %v358
        %422 = vmatpush1.bf16.msra.mxu0 %v357
        %423 = vmatprep.subr.bf16.mxu0 %v360
        %424 = vmatpush1.bf16.msra.mxu0 %v359
        %425 = vmatprep.subr.bf16.mxu0 %v362
        %426 = vmatpush1.bf16.msra.mxu0 %v361
        %427 = vmatprep.subr.bf16.mxu0 %v364
        %428 = vmatpush1.bf16.msra.mxu0 %v363
        %429 = vmatprep.subr.bf16.mxu0 %v366
        %430 = vmatpush1.bf16.msra.mxu0 %v365
        %431 = vmatprep.subr.bf16.mxu0 %v368
        %432 = vmatpush1.bf16.msra.mxu0 %v367
        %433 = vmatprep.subr.bf16.mxu0 %v370
        %434 = vmatpush1.bf16.msra.mxu0 %v369
        %435 = vmatprep.subr.bf16.mxu0 %v372
        %436 = vmatpush1.bf16.msra.mxu0 %v371
        %437 = vmatprep.subr.bf16.mxu0 %v374
        %438 = vmatpush1.bf16.msra.mxu0 %v373
        %439 = vmatprep.mubr.bf16.mxu0 %v244
        %440 = vmatmul.mubr.bf16.gmra.mrb[0].mxu0 %v243
        %v441 = vpop.f32.mrb[0].mxu0
        %v442 = vadd.f32 0.0, %v441
        %v443 = vpop.f32.mrb[0].mxu0
        %v444 = vadd.f32 0.0, %v443
        %v445 = vpop.f32.mrb[0].mxu0
        %v446 = vadd.f32 0.0, %v445
        %v447 = vpop.f32.mrb[0].mxu0
        %v448 = vadd.f32 0.0, %v447
        %449 = vdwg.mxu0
        %v450 = vld [vmem:[#allocation2] sm:$0x1]
        %vm453 = vcmask 1040384
        %v454 = vrot.slane %v444, 7
        %v455 = vrot.slane %v448, 7
        %v456 = vsel %vm453, %v454, %v455
        %v459 = vsel %vm453, %v450, %v454
        %v460 = vadd.f32 %v442, %v459
        %v461 = vadd.f32 %v446, %v456
        %462 = vst [vmem:[%s195] sm:$0xff] %v460
        %463 = vst [vmem:[%s195 + $0x8] sm:$0xff] %v461
        %464 = vst [vmem:[#allocation2 - $0x7] sm:$0x80] %v448
        %s465 = sand.u32 %s91, 1
        %s466 = scalar_lea.sflag [#allocation5], %s465
        %s467 = sand.u32 %s91, 1
        %s468 = smul.addr %s467, 16
        %s469 = scalar_lea.vmem [#allocation8], %s468
        // Predicated region
        $region41: #{tpu_custom_call.1} parent=27 // pred_check
          %p470 = pneg %p101
        $region42: #{tpu_custom_call.1} parent=27 // pred_check_branch
          %472 = sbr.rel (%p470) target = $region44
        $region43: #{tpu_custom_call.1} parent=27 // pred_region
          %s473 = smul.u32 2, %s25
          %s475 = ssub.s32 256, 256
          %476 = vsyncadd %s466, %s475
          %s477 = smul.addr %s24, 2
          %s478 = sadd.s32 %s473, %s477
          %s479 = smul.addr %s478, 128
          %s480 = scalar_lea.hbm %s2, %s479
          %s481 = sshll.u32 %s469, 4
          %s482 = int_to_ptr.vmem [resolvable:$true] %s481
          %487 = dma.vmem_to_hbm [thread:$0]  %s482, 256, %s480, %s466, 128, 128, 8
        $region44: #{tpu_custom_call.1} parent=27 // pred_fallthru
          _
      $region28: #{tpu_custom_call.1} parent=5 // pred_fallthru
        _
      %p488 = scmp.le.s32.totalorder 2, %s15
      // Predicated region
      $region45: #{tpu_custom_call.1} parent=5 // pred_check
        %p489 = pneg %p488
      $region46: #{tpu_custom_call.1} parent=5 // pred_check_branch
        %491 = sbr.rel (%p489) target = $region48
      $region47: #{tpu_custom_call.1} parent=5 // pred_region
        %s492 = ssub.s32 %s15, 2
        // Predicated region
        $region49: #{tpu_custom_call.1} parent=47 // pred_check
          %p493 = pneg %p107
        $region50: #{tpu_custom_call.1} parent=47 // pred_check_branch
          %495 = sbr.rel (%p493) target = $region52
        $region51: #{tpu_custom_call.1} parent=47 // pred_region
          %s496 = sand.u32 %s92, 1
          %s497 = scalar_lea.sflag [#allocation5], %s496
          %s498 = sand.u32 %s92, 1
          %s499 = smul.addr %s498, 16
          %s500 = scalar_lea.vmem [#allocation8], %s499
          %501 = dma.done %s497, 256
        $region52: #{tpu_custom_call.1} parent=47 // pred_fallthru
          _
      $region48: #{tpu_custom_call.1} parent=5 // pred_fallthru
        _
    $region6: #{tpu_custom_call.1} parent=1 // loop_footer
      %s19 = sadd.s32 1, %s15
    $region7: #{tpu_custom_call.1} parent=1 // loop_footer_branch
      %14 = sbr.rel target = $region3
    $region8: #{tpu_custom_call.1} parent=1 // loop_exit
      _
    %502 = vsyncpa [#allocation4], 1
    %s503 = scalar_lea.sflag [#allocation4], 1
    %504 = vsyncpa %s503, 1
    %505 = vsyncpa [#allocation7], 1
    %506 = vsyncpa [#allocation5], 1
    %s507 = scalar_lea.sflag [#allocation5], 1
    %508 = vsyncpa %s507, 1

</llo_original>
